<compile_context>
chip_gen: v5e
topology: v5e:2x2
jax: 0.10.0
libtpu: 0.0.40
codegen_flags: <defaults>
</compile_context>

<pallas_src>
import jax
import jax.numpy as jnp
from jax.experimental import pallas as pl
from jax.experimental.pallas import tpu as pltpu

_LANE = 512                            # stored last dim: multiple of 128 lanes
_TARGET_BLOCK_BYTES = 2 * 1024 * 1024  # ~2 MiB per input block


def _round_up(a: int, b: int) -> int:
    return ((a + b - 1) // b) * b


def _gelu_kernel(x_ref, o_ref):
    x = x_ref[...].astype(jnp.float32)
    # exact GELU: 0.5 * x * (1 + erf(x / sqrt(2)))
    z = x * 0.7071067811865476
    az = jnp.abs(z)
    # Abramowitz & Stegun 7.1.26 approximation of erf(|z|), |err| < 1.5e-7.
    t = 1.0 / (1.0 + 0.3275911 * az)
    poly = t * (0.254829592 + t * (-0.284496736 + t * (1.421413741
               + t * (-1.453152027 + t * 1.061405429))))
    erf_abs = 1.0 - poly * jnp.exp(-az * az)
    erf_z = jnp.where(z < 0.0, -erf_abs, erf_abs)
    o_ref[...] = (0.5 * x * (1.0 + erf_z)).astype(o_ref.dtype)


@jax.jit
def gelu(x):
    """Elementwise exact GELU, matching torch.nn.functional.gelu (approximate='none')."""
    orig_shape = x.shape
    total = x.size
    if total == 0:
        return x
    itemsize = jnp.dtype(x.dtype).itemsize

    # Lane-dense 2D view: (rows, _LANE); pad only up to a multiple of
    # 8 sublanes * 512 lanes (<= 4095 extra elements).
    row_quantum = 8 * _LANE
    padded_total = _round_up(total, row_quantum)
    n_rows = padded_total // _LANE

    # Block row-count: ~2 MiB per block, multiple of 8 sublanes.
    max_rows = max(8, (_TARGET_BLOCK_BYTES // (_LANE * itemsize)) // 8 * 8)
    block_rows = min(n_rows, max_rows)
    grid_steps = pl.cdiv(n_rows, block_rows)  # last block may be ragged (masked stores)

    # Double-buffered in + out blocks must fit the smallest default scoped VMEM (16 MiB on v5e).
    assert 4 * block_rows * _LANE * itemsize <= 16 * 1024 * 1024

    needs_pad = padded_total != total
    x_flat = x.reshape(-1)
    if needs_pad:
        x_flat = jnp.pad(x_flat, (0, padded_total - total))  # gelu(0) == 0
    x2d = x_flat.reshape(n_rows, _LANE)

    out2d = pl.pallas_call(
        _gelu_kernel,
        out_shape=jax.ShapeDtypeStruct((n_rows, _LANE), x.dtype),
        grid=(grid_steps,),
        in_specs=[pl.BlockSpec((block_rows, _LANE), lambda i: (i, 0))],
        out_specs=pl.BlockSpec((block_rows, _LANE), lambda i: (i, 0)),
        # Reuse the padded slab's HBM buffer only when it is a true intermediate.
        input_output_aliases=({0: 0} if needs_pad else {}),
        compiler_params=pltpu.CompilerParams(
            dimension_semantics=("parallel",)),
    )(x2d)

    return out2d.reshape(-1)[:total].reshape(orig_shape)


if __name__ == "__main__":
    key = jax.random.PRNGKey(0)
    N, C, H, W = 2, 4, 16, 16
    x = jax.random.normal(key, (N, C, H, W), dtype=jnp.float32)

    out = jax.block_until_ready(gelu(x))

    # Pure-JAX reference: exact (erf-based) GELU, same as torch F.gelu default.
    ref = jax.nn.gelu(x, approximate=False)
    assert out.shape == (N, C, H, W)
    assert out.dtype == x.dtype
    assert jnp.allclose(out, ref, atol=2e-5, rtol=1e-5), float(
        jnp.max(jnp.abs(out - ref)))

    print("KERNEL_OK")
</pallas_src>

<mosaic_0001>
module attributes {stable_mosaic.version = 11 : i64} {
  func.func @_gelu_kernel(%arg0: i32, %arg1: memref<8x512xf32, #tpu.memory_space<vmem>>, %arg2: memref<8x512xf32, #tpu.memory_space<vmem>>) attributes {dimension_semantics = [#tpu.dimension_semantics<parallel>], iteration_bounds = array<i64: 1>, scalar_prefetch = 0 : i64, scratch_operands = 0 : i64, tpu.core_type = #tpu.core_type<tc>, window_params = [{transform_indices = @transform_0, window_bounds = array<i64: 8, 512>}, {transform_indices = @transform_1, window_bounds = array<i64: 8, 512>}]} {
    %c0 = arith.constant 0 : index
    %c0_0 = arith.constant 0 : index
    %0 = vector.load %arg1[%c0, %c0_0] : memref<8x512xf32, #tpu.memory_space<vmem>>, vector<8x512xf32>
    %cst = arith.constant 0.707106769 : f32
    %1 = vector.broadcast %cst : f32 to vector<8x512xf32>
    %2 = arith.mulf %0, %1 : vector<8x512xf32>
    %3 = math.absf %2 : vector<8x512xf32>
    %cst_1 = arith.constant 0.327591091 : f32
    %4 = vector.broadcast %cst_1 : f32 to vector<8x512xf32>
    %5 = arith.mulf %4, %3 : vector<8x512xf32>
    %cst_2 = arith.constant 1.000000e+00 : f32
    %6 = vector.broadcast %cst_2 : f32 to vector<8x512xf32>
    %7 = arith.addf %6, %5 : vector<8x512xf32>
    %cst_3 = arith.constant 1.000000e+00 : f32
    %8 = vector.broadcast %cst_3 : f32 to vector<8x512xf32>
    %9 = arith.divf %8, %7 : vector<8x512xf32>
    %cst_4 = arith.constant 1.06140542 : f32
    %10 = vector.broadcast %cst_4 : f32 to vector<8x512xf32>
    %11 = arith.mulf %9, %10 : vector<8x512xf32>
    %cst_5 = arith.constant -1.45315206 : f32
    %12 = vector.broadcast %cst_5 : f32 to vector<8x512xf32>
    %13 = arith.addf %12, %11 : vector<8x512xf32>
    %14 = arith.mulf %9, %13 : vector<8x512xf32>
    %cst_6 = arith.constant 1.42141378 : f32
    %15 = vector.broadcast %cst_6 : f32 to vector<8x512xf32>
    %16 = arith.addf %15, %14 : vector<8x512xf32>
    %17 = arith.mulf %9, %16 : vector<8x512xf32>
    %cst_7 = arith.constant -0.284496725 : f32
    %18 = vector.broadcast %cst_7 : f32 to vector<8x512xf32>
    %19 = arith.addf %18, %17 : vector<8x512xf32>
    %20 = arith.mulf %9, %19 : vector<8x512xf32>
    %cst_8 = arith.constant 0.254829586 : f32
    %21 = vector.broadcast %cst_8 : f32 to vector<8x512xf32>
    %22 = arith.addf %21, %20 : vector<8x512xf32>
    %23 = arith.mulf %9, %22 : vector<8x512xf32>
    %cst_9 = arith.constant 0.000000e+00 : f32
    %24 = vector.broadcast %cst_9 : f32 to vector<8x512xf32>
    %25 = arith.subf %24, %3 : vector<8x512xf32>
    %26 = arith.mulf %25, %3 : vector<8x512xf32>
    %27 = math.exp %26 : vector<8x512xf32>
    %28 = arith.mulf %23, %27 : vector<8x512xf32>
    %cst_10 = arith.constant 1.000000e+00 : f32
    %29 = vector.broadcast %cst_10 : f32 to vector<8x512xf32>
    %30 = arith.subf %29, %28 : vector<8x512xf32>
    %cst_11 = arith.constant 0.000000e+00 : f32
    %31 = vector.broadcast %cst_11 : f32 to vector<8x512xf32>
    %32 = arith.cmpf olt, %2, %31 : vector<8x512xf32>
    %cst_12 = arith.constant 0.000000e+00 : f32
    %33 = vector.broadcast %cst_12 : f32 to vector<8x512xf32>
    %34 = arith.subf %33, %30 : vector<8x512xf32>
    %35 = arith.select %32, %34, %30 : vector<8x512xi1>, vector<8x512xf32>
    %cst_13 = arith.constant 5.000000e-01 : f32
    %36 = vector.broadcast %cst_13 : f32 to vector<8x512xf32>
    %37 = arith.mulf %36, %0 : vector<8x512xf32>
    %cst_14 = arith.constant 1.000000e+00 : f32
    %38 = vector.broadcast %cst_14 : f32 to vector<8x512xf32>
    %39 = arith.addf %38, %35 : vector<8x512xf32>
    %40 = arith.mulf %37, %39 : vector<8x512xf32>
    %c0_15 = arith.constant 0 : index
    %c0_16 = arith.constant 0 : index
    %41 = vector.load %arg2[%c0_15, %c0_16] : memref<8x512xf32, #tpu.memory_space<vmem>>, vector<8x512xf32>
    tpu.vector_store %arg2[%c0_15, %c0_16], %40 {strides = array<i32>} : memref<8x512xf32, #tpu.memory_space<vmem>>, vector<8x512xf32>,
    return
  }
  func.func @transform_0(%arg0: i32) -> (i32, i32) {
    %c0_i32 = arith.constant 0 : i32
    %c0_i32_0 = arith.constant 0 : i32
    return %arg0, %c0_i32 : i32, i32
  }
  func.func @transform_1(%arg0: i32) -> (i32, i32) {
    %c0_i32 = arith.constant 0 : i32
    %c0_i32_0 = arith.constant 0 : i32
    return %arg0, %c0_i32 : i32, i32
  }
}

</mosaic_0001>

<llo_original>
// kernel: gelu.1
$region0: #{gelu.1}
  #allocation0 [shape = 'u32[]', space=smem, size = 0x4, offset = 0x4, fixed_abs, tag = 'smem constant byte address 0x4 - core index']
  #allocation1 [shape = 'u32[72,128]{1,0:T(1,128)}', space=vmem, size = 0x9000, scoped, tag = 'internal scratch']
  %s0 = inlined_call_operand.vmem [shape: f32[8,512], index: 0, kind: input, shape index: {}, may-alias: {0,1}]
  %s1 = inlined_call_operand.vmem [shape: f32[8,512], index: 1, kind: output, shape index: {}, may-alias: {0,1}]
  %s2 = sld [smem:[#allocation0]]
  $region14: #{gelu.1} parent=0
    _
  %s4 = ssub.s32 1, %s2
  %s5 = scalar_select 0, %s4, %s2
  // Predicated region
  $region2: #{gelu.1} parent=0 // pred_check
    _
  $region3: #{gelu.1} parent=0 // pred_check_branch
    %7 = sbr.rel (0) target = $region5
  $region4: #{gelu.1} parent=0 // pred_region
    _
  $region5: #{gelu.1} parent=0 // pred_fallthru
    _
  %v8 = vld [vmem:[%s0] sm:$0xff]
  %v9 = vld [vmem:[%s0 + $0x8] sm:$0xff]
  %v10 = vld [vmem:[%s0 + $0x10] sm:$0xff]
  %v11 = vld [vmem:[%s0 + $0x18] sm:$0xff]
  %v12 = vmul.f32 %v8, 0.70710677
  %v13 = vmul.f32 %v9, 0.70710677
  %v14 = vmul.f32 %v10, 0.70710677
  %v15 = vmul.f32 %v11, 0.70710677
  %v16 = vand.u32 2147483647, %v12
  %v17 = vand.u32 2147483647, %v13
  %v18 = vand.u32 2147483647, %v14
  %v19 = vand.u32 2147483647, %v15
  %v20 = vmul.f32 %v16, 0.3275911
  %v21 = vmul.f32 %v17, 0.3275911
  %v22 = vmul.f32 %v18, 0.3275911
  %v23 = vmul.f32 %v19, 0.3275911
  %v24 = vadd.f32 %v20, 1.0
  %v25 = vadd.f32 %v21, 1.0
  %v26 = vadd.f32 %v22, 1.0
  %v27 = vadd.f32 %v23, 1.0
  %v28 = vrcp.pop %v24
  %v29 = vmul.f32 %v24, %v28
  %v30 = vsub.f32 1.0, %v29
  %v31 = vmul.f32 %v28, %v30
  %v32 = vadd.f32 %v28, %v31
  %vm33 = vweird.f32 %v24
  %vm34 = vweird.f32 %v28
  %vm35 = vmor %vm33, %vm34
  %v36 = vsel %vm35, %v28, %v32
  %v37 = vand.u32 2147483647, %v24
  %vm38 = vcmp.eq.f32.partialorder %v37, 8.507059e+37
  %v39 = vand.u32 %v24, 2147483648
  %v40 = vor.u32 1.1754944e-38, %v39
  %v41 = vsel %vm38, %v40, %v36
  %v42 = vmul.f32 1.0, %v41
  %v43 = vrcp.pop %v25
  %v44 = vmul.f32 %v25, %v43
  %v45 = vsub.f32 1.0, %v44
  %v46 = vmul.f32 %v43, %v45
  %v47 = vadd.f32 %v43, %v46
  %vm48 = vweird.f32 %v25
  %vm49 = vweird.f32 %v43
  %vm50 = vmor %vm48, %vm49
  %v51 = vsel %vm50, %v43, %v47
  %v52 = vand.u32 2147483647, %v25
  %vm53 = vcmp.eq.f32.partialorder %v52, 8.507059e+37
  %v54 = vand.u32 %v25, 2147483648
  %v55 = vor.u32 1.1754944e-38, %v54
  %v56 = vsel %vm53, %v55, %v51
  %v57 = vmul.f32 1.0, %v56
  %v58 = vrcp.pop %v26
  %v59 = vmul.f32 %v26, %v58
  %v60 = vsub.f32 1.0, %v59
  %v61 = vmul.f32 %v58, %v60
  %v62 = vadd.f32 %v58, %v61
  %vm63 = vweird.f32 %v26
  %vm64 = vweird.f32 %v58
  %vm65 = vmor %vm63, %vm64
  %v66 = vsel %vm65, %v58, %v62
  %v67 = vand.u32 2147483647, %v26
  %vm68 = vcmp.eq.f32.partialorder %v67, 8.507059e+37
  %v69 = vand.u32 %v26, 2147483648
  %v70 = vor.u32 1.1754944e-38, %v69
  %v71 = vsel %vm68, %v70, %v66
  %v72 = vmul.f32 1.0, %v71
  %v73 = vrcp.pop %v27
  %v74 = vmul.f32 %v27, %v73
  %v75 = vsub.f32 1.0, %v74
  %v76 = vmul.f32 %v73, %v75
  %v77 = vadd.f32 %v73, %v76
  %vm78 = vweird.f32 %v27
  %vm79 = vweird.f32 %v73
  %vm80 = vmor %vm78, %vm79
  %v81 = vsel %vm80, %v73, %v77
  %v82 = vand.u32 2147483647, %v27
  %vm83 = vcmp.eq.f32.partialorder %v82, 8.507059e+37
  %v84 = vand.u32 %v27, 2147483648
  %v85 = vor.u32 1.1754944e-38, %v84
  %v86 = vsel %vm83, %v85, %v81
  %v87 = vmul.f32 1.0, %v86
  %v88 = vmul.f32 %v42, 1.0614054
  %v89 = vmul.f32 %v57, 1.0614054
  %v90 = vmul.f32 %v72, 1.0614054
  %v91 = vmul.f32 %v87, 1.0614054
  %v92 = vadd.f32 %v88, -1.4531521
  %v93 = vadd.f32 %v89, -1.4531521
  %v94 = vadd.f32 %v90, -1.4531521
  %v95 = vadd.f32 %v91, -1.4531521
  %v96 = vmul.f32 %v42, %v92
  %v97 = vmul.f32 %v57, %v93
  %v98 = vmul.f32 %v72, %v94
  %v99 = vmul.f32 %v87, %v95
  %v100 = vadd.f32 %v96, 1.4214138
  %v101 = vadd.f32 %v97, 1.4214138
  %v102 = vadd.f32 %v98, 1.4214138
  %v103 = vadd.f32 %v99, 1.4214138
  %v104 = vmul.f32 %v42, %v100
  %v105 = vmul.f32 %v57, %v101
  %v106 = vmul.f32 %v72, %v102
  %v107 = vmul.f32 %v87, %v103
  %v108 = vadd.f32 %v104, -0.28449672
  %v109 = vadd.f32 %v105, -0.28449672
  %v110 = vadd.f32 %v106, -0.28449672
  %v111 = vadd.f32 %v107, -0.28449672
  %v112 = vmul.f32 %v42, %v108
  %v113 = vmul.f32 %v57, %v109
  %v114 = vmul.f32 %v72, %v110
  %v115 = vmul.f32 %v87, %v111
  %v116 = vadd.f32 %v112, 0.2548296
  %v117 = vadd.f32 %v113, 0.2548296
  %v118 = vadd.f32 %v114, 0.2548296
  %v119 = vadd.f32 %v115, 0.2548296
  %v120 = vmul.f32 %v42, %v116
  %v121 = vmul.f32 %v57, %v117
  %v122 = vmul.f32 %v72, %v118
  %v123 = vmul.f32 %v87, %v119
  %v124 = vsub.f32 0.0, %v16
  %v125 = vsub.f32 0.0, %v17
  %v126 = vsub.f32 0.0, %v18
  %v127 = vsub.f32 0.0, %v19
  %v128 = vmul.f32 %v124, %v16
  %v129 = vmul.f32 %v125, %v17
  %v130 = vmul.f32 %v126, %v18
  %v131 = vmul.f32 %v127, %v19
  %v132 = vmul.f32 %v128, 1.442695
  %v133 = vpow.pop %v132
  %v134 = vmul.f32 %v129, 1.442695
  %v135 = vpow.pop %v134
  %v136 = vmul.f32 %v130, 1.442695
  %v137 = vpow.pop %v136
  %v138 = vmul.f32 %v131, 1.442695
  %v139 = vpow.pop %v138
  %v140 = vmul.f32 %v120, %v133
  %v141 = vmul.f32 %v121, %v135
  %v142 = vmul.f32 %v122, %v137
  %v143 = vmul.f32 %v123, %v139
  %v144 = vsub.f32 1.0, %v140
  %v145 = vsub.f32 1.0, %v141
  %v146 = vsub.f32 1.0, %v142
  %v147 = vsub.f32 1.0, %v143
  %vm148 = vcmp.lt.f32.partialorder %v12, 0.0
  %vm149 = vcmp.lt.f32.partialorder %v13, 0.0
  %vm150 = vcmp.lt.f32.partialorder %v14, 0.0
  %vm151 = vcmp.lt.f32.partialorder %v15, 0.0
  %v152 = vsub.f32 0.0, %v144
  %v153 = vsub.f32 0.0, %v145
  %v154 = vsub.f32 0.0, %v146
  %v155 = vsub.f32 0.0, %v147
  %v156 = vsel %vm148, %v152, %v144
  %v157 = vsel %vm149, %v153, %v145
  %v158 = vsel %vm150, %v154, %v146
  %v159 = vsel %vm151, %v155, %v147
  %v160 = vmul.f32 %v8, 0.5
  %v161 = vmul.f32 %v9, 0.5
  %v162 = vmul.f32 %v10, 0.5
  %v163 = vmul.f32 %v11, 0.5
  %v164 = vadd.f32 %v156, 1.0
  %v165 = vadd.f32 %v157, 1.0
  %v166 = vadd.f32 %v158, 1.0
  %v167 = vadd.f32 %v159, 1.0
  %v168 = vmul.f32 %v160, %v164
  %v169 = vmul.f32 %v161, %v165
  %v170 = vmul.f32 %v162, %v166
  %v171 = vmul.f32 %v163, %v167
  %172 = vst [vmem:[%s1] sm:$0xff] %v168
  %173 = vst [vmem:[%s1 + $0x8] sm:$0xff] %v169
  %174 = vst [vmem:[%s1 + $0x10] sm:$0xff] %v170
  %175 = vst [vmem:[%s1 + $0x18] sm:$0xff] %v171
  // Predicated region
  $region6: #{gelu.1} parent=0 // pred_check
    _
  $region7: #{gelu.1} parent=0 // pred_check_branch
    %177 = sbr.rel (0) target = $region9
  $region8: #{gelu.1} parent=0 // pred_region
    _
  $region9: #{gelu.1} parent=0 // pred_fallthru
    _
  // Predicated region
  $region10: #{gelu.1} parent=0 // pred_check
    _
  $region11: #{gelu.1} parent=0 // pred_check_branch
    %179 = sbr.rel (0) target = $region13
  $region12: #{gelu.1} parent=0 // pred_region
    _
  $region13: #{gelu.1} parent=0 // pred_fallthru
    _

</llo_original>
